<compile_context>
chip_gen: v7x
topology: tpu7x:2x2x1
jax: 0.10.0
libtpu: 0.0.40
codegen_flags: <defaults>
</compile_context>

<pallas_src>
import math

import jax
import jax.numpy as jnp
from jax.experimental import pallas as pl
from jax.experimental.pallas import tpu as pltpu

# Module hyper-parameters (from __init__ defaults)
WEIGHTS = (0.3, 0.5, 0.2)
SMOOTH = 1e-06
FOCAL_ALPHA = 0.1
FOCAL_GAMMA = 2           # integer power; implemented as an explicit square
IOU_EPS = 1e-06

_LANE = 128
_SUBLANE = 8
_NUM_ACC = 6                              # focal, t, x, x*t, pred_bin, t*pred_bin
_VMEM_TILE_BUDGET = 16 * 1024 * 1024      # double-buffered input tiles stay under this
_MAX_TILE = 8192                          # lane-tile cap (multiple of 128)
_SINGLE_BLOCK_MAX = 1024                  # below this many lanes: one un-tiled block
_P2_MIN_LANES = 4096                      # enough work to split across 2 TensorCores
_TARGET_STEPS = 4                         # per-core pipeline depth target


def _round_up(x, m):
    return -(-x // m) * m


def _choose_tiling(n_p, bs, in_bpe):
    """Pick (P, num_k, tile): P-way parallel lane split x num_k sequential tiles per core."""
    per_col = bs * in_bpe * 2                       # x2: double-buffered input pipeline
    max_tile = max(_LANE, min(_MAX_TILE, (_VMEM_TILE_BUDGET // per_col) // _LANE * _LANE))

    if n_p <= min(_SINGLE_BLOCK_MAX, max_tile):
        return 1, 1, n_p                            # tiny input: single full-width block

    p0 = 2 if n_p >= _P2_MIN_LANES else 1
    tile0 = max(_LANE, min(max_tile, _round_up(-(-n_p // (p0 * _TARGET_STEPS)), _LANE)))

    if p0 == 1:
        return 1, -(-n_p // tile0), tile0

    # 2-core split: find a tile whose total block count is even (>= 4) so the two cores
    # split the lane range exactly (no out-of-bounds block starts anywhere).
    for delta in range(0, max_tile, _LANE):
        cands = (tile0,) if delta == 0 else (tile0 - delta, tile0 + delta)
        for cand in cands:
            if cand < _LANE or cand > max_tile:
                continue
            nt = -(-n_p // cand)
            if nt >= 4 and nt % 2 == 0:
                return 2, nt // 2, cand
    return 1, -(-n_p // tile0), tile0               # fallback: single-core sequential grid


def _make_kernel(bs, tile, num_k, nt, n_p, lane_wide):
    """Build the partial-sum kernel closure for fixed static tiling parameters."""
    rem = n_p - (nt - 1) * tile          # valid lanes in the global last block
    has_edge = rem != tile               # only then does any tile need masking
    n_chunks = tile // _LANE if lane_wide else 0

    def _row_partial(q):
        # Per-row partial sums.  Lane-wide (bs, 128) via lane-aligned chunk adds when the
        # tile is a multiple of 128 (no XLU cross-lane reduce in the hot loop); the tiny
        # non-aligned single-block case falls back to a plain row sum.
        if lane_wide:
            part = q[:, 0:_LANE]
            for c in range(1, n_chunks):
                part = part + q[:, c * _LANE:(c + 1) * _LANE]
            return part
        return jnp.sum(q, axis=1, keepdims=True)

    def kernel(pred_ref, gt_ref, part_ref):
        k = pl.program_id(1)

        # -------- init this core's resident accumulator block at its first tile --------
        @pl.when(k == 0)
        def _init():
            part_ref[...] = jnp.zeros_like(part_ref)

        x = pred_ref[...].astype(jnp.float32)   # (bs, tile) raw mask / logits
        t = gt_ref[...].astype(jnp.float32)     # (bs, tile) ground truth

        def _accumulate(x, t):
            xt = x * t
            # stable BCE-with-logits: max(x,0) - x*t + log(1 + exp(-|x|))
            ce = jnp.maximum(x, 0.0) - xt + jnp.log(1.0 + jnp.exp(-jnp.abs(x)))
            # 1 - p_t with p_t formed from the RAW inputs (faithful to the PyTorch module)
            one_m_pt = x + t - 2.0 * xt
            alpha_t = (1.0 - FOCAL_ALPHA) + (2.0 * FOCAL_ALPHA - 1.0) * t
            focal = alpha_t * ce * (one_m_pt * one_m_pt)      # gamma == 2
            pb = (x > 0.5).astype(jnp.float32)                # IoU thresholds the raw mask
            tpb = t * pb
            for j, q in enumerate((focal, t, x, xt, pb, tpb)):
                part = _row_partial(q)
                if lane_wide:
                    part_ref[0, j] += part
                else:
                    part_ref[0, j, :, 0:1] += part

        if has_edge:
            g = pl.program_id(0) * num_k + k                  # global tile index
            is_last = g == nt - 1

            @pl.when(jnp.logical_not(is_last))
            def _full():
                _accumulate(x, t)

            @pl.when(is_last)
            def _tail():
                # Mask the ragged tail in-kernel (no wrapper-side jnp.pad / extra HBM pass).
                lane = jax.lax.broadcasted_iota(jnp.int32, (bs, tile), 1)
                valid = lane < rem
                _accumulate(jnp.where(valid, x, 0.0), jnp.where(valid, t, 0.0))
        else:
            _accumulate(x, t)

    return kernel


def segmentation_loss(pred_mask, gt_mask, pred_scores):
    """pred_mask, gt_mask: (B, *spatial) any float/int dtype; pred_scores: (B,).

    Returns (total f32 scalar, iou (B,) f32).  Keep inputs narrow end-to-end (pred as
    bf16, gt as int8/bool straight from the producer) -- the f32 cast happens in-register
    inside the kernel, so narrower inputs directly cut HBM traffic.
    """
    assert pred_mask.shape == gt_mask.shape, "Shape mismatch between prediction and target"
    B = pred_mask.shape[0]
    N = math.prod(pred_mask.shape[1:])

    # Sublane packing: repack (B, N) -> (B*s, N/s) row-major with the smallest s making
    # B*s a multiple of 8 (and s | N) so every vreg sublane carries data.
    sub = 1
    if B % _SUBLANE != 0:
        for cand in (_SUBLANE // math.gcd(B, _SUBLANE), _SUBLANE):
            if N % cand == 0:
                sub = cand
                break
    bs = B * sub
    n_p = N // sub

    pred2d = pred_mask.reshape(bs, n_p)     # native dtype, no HBM up-cast
    gt2d = gt_mask.reshape(bs, n_p)

    in_bpe = pred2d.dtype.itemsize + gt2d.dtype.itemsize
    P, num_k, tile = _choose_tiling(n_p, bs, in_bpe)
    nt = P * num_k                           # == cdiv(n_p, tile) by construction
    lane_wide = (tile % _LANE == 0)

    kernel = _make_kernel(bs, tile, num_k, nt, n_p, lane_wide)

    in_map = lambda p, k: (0, p * num_k + k)
    bytes_accessed = int(pred2d.size * pred2d.dtype.itemsize
                         + gt2d.size * gt2d.dtype.itemsize
                         + P * _NUM_ACC * bs * _LANE * 4)

    partials = pl.pallas_call(
        kernel,
        out_shape=jax.ShapeDtypeStruct((P, _NUM_ACC, bs, _LANE), jnp.float32),
        grid=(P, num_k),
        in_specs=[
            pl.BlockSpec((bs, tile), in_map),
            pl.BlockSpec((bs, tile), in_map),
        ],
        out_specs=pl.BlockSpec((1, _NUM_ACC, bs, _LANE), lambda p, k: (p, 0, 0, 0)),
        compiler_params=pltpu.CompilerParams(
            dimension_semantics=("parallel", "arbitrary"),   # 2-TC split x sequential reduce
            vmem_limit_bytes=32 * 1024 * 1024,               # generation-safe (v7x: 64 MiB)
        ),
        cost_estimate=pl.CostEstimate(
            flops=20 * B * N,
            transcendentals=2 * B * N,
            bytes_accessed=bytes_accessed,
        ),
    )(pred2d, gt2d)

    # ---------------- O(B) finalize in plain JAX ----------------
    per_row = jnp.sum(partials, axis=(0, 3))                       # (6, bs)
    per_batch = jnp.sum(per_row.reshape(_NUM_ACC, B, sub), axis=2)  # (6, B)

    focal = jnp.sum(per_batch[0]) / float(B * N)                   # true mean over B*N
    s_t, s_x, s_xt, s_pb, s_tpb = (per_batch[1], per_batch[2], per_batch[3],
                                   per_batch[4], per_batch[5])

    w = 1.0 / (s_t * s_t + SMOOTH)
    dice = 1.0 - (2.0 * jnp.sum(w * s_xt) + SMOOTH) / (jnp.sum(w * (s_x + s_t)) + SMOOTH)

    union = s_t + s_pb - s_tpb
    iou = (s_tpb + IOU_EPS) / (union + IOU_EPS)

    ps = jax.nn.sigmoid(pred_scores.reshape(-1).astype(jnp.float32))
    diff = ps - iou
    score = 0.7 * jnp.mean(jnp.abs(diff)) + 0.3 * jnp.mean(diff * diff)   # 'combo'

    total = focal * WEIGHTS[0] + dice * WEIGHTS[1] + score * WEIGHTS[2]
    return total, iou


def _reference_loss(pred_mask, gt_mask, pred_scores):
    """Plain-JAX reference mirroring the PyTorch module, for a correctness check."""
    B = pred_mask.shape[0]
    x = pred_mask.reshape(B, -1).astype(jnp.float32)
    t = gt_mask.reshape(B, -1).astype(jnp.float32)
    ce = jnp.maximum(x, 0.0) - x * t + jnp.log(1.0 + jnp.exp(-jnp.abs(x)))
    p_t = x * t + (1.0 - x) * (1.0 - t)
    loss = ce * (1.0 - p_t) ** 2
    alpha_t = FOCAL_ALPHA * t + (1.0 - FOCAL_ALPHA) * (1.0 - t)
    focal = jnp.mean(alpha_t * loss)
    s_gt = jnp.sum(t, axis=1)
    w = 1.0 / (s_gt ** 2 + SMOOTH)
    num = jnp.sum(w * jnp.sum(x * t, axis=1))
    den = jnp.sum(w * jnp.sum(x + t, axis=1))
    dice = 1.0 - (2.0 * num + SMOOTH) / (den + SMOOTH)
    pb = (x > 0.5).astype(jnp.float32)
    inter = jnp.sum(t * pb, axis=1)
    union = s_gt + jnp.sum(pb, axis=1) - inter
    iou = (inter + IOU_EPS) / (union + IOU_EPS)
    ps = jax.nn.sigmoid(pred_scores.reshape(-1).astype(jnp.float32))
    diff = ps - iou
    score = 0.7 * jnp.mean(jnp.abs(diff)) + 0.3 * jnp.mean(diff * diff)
    total = focal * WEIGHTS[0] + dice * WEIGHTS[1] + score * WEIGHTS[2]
    return total, iou


if __name__ == "__main__":
    key = jax.random.PRNGKey(0)
    loss_fn = jax.jit(segmentation_loss)

    # (B, H, W, pred_dtype, gt_dtype)
    cases = [
        (2, 16, 16, jnp.float32, jnp.float32),    # tiny single block, sublane-packed x4
        (3, 40, 50, jnp.float32, jnp.float32),    # single block with ragged lane width (250)
        (4, 60, 60, jnp.bfloat16, jnp.int8),      # 1-core tiled grid + in-kernel tail mask
        (2, 128, 132, jnp.bfloat16, jnp.int8),    # 2-way parallel split + tail mask, narrow dtypes
        (9, 32, 32, jnp.bfloat16, jnp.int8),      # B not a multiple of 8 -> packed x8
    ]

    for idx, (B, H, W, pdt, gdt) in enumerate(cases):
        k1, k2, k3 = jax.random.split(jax.random.fold_in(key, idx), 3)
        pred_mask = jax.random.normal(k1, (B, H, W), dtype=jnp.float32).astype(pdt)
        gt_mask = (jax.random.uniform(k2, (B, H, W)) > 0.5).astype(gdt)
        pred_scores = jax.random.normal(k3, (B,), dtype=jnp.float32)

        total, iou = loss_fn(pred_mask, gt_mask, pred_scores)
        total = jax.block_until_ready(total)
        iou = jax.block_until_ready(iou)

        ref_total, ref_iou = _reference_loss(pred_mask, gt_mask, pred_scores)
        assert jnp.allclose(total, ref_total, atol=1e-4, rtol=1e-4), \
            ("total mismatch", B, H, W, total, ref_total)
        assert jnp.allclose(iou, ref_iou, atol=1e-4, rtol=1e-4), \
            ("iou mismatch", B, H, W, iou, ref_iou)

    print("KERNEL_OK")
</pallas_src>

<mosaic_0001>
module attributes {stable_mosaic.version = 11 : i64} {
  func.func @kernel(%arg0: i32, %arg1: i32, %arg2: memref<8x64xf32, #tpu.memory_space<vmem>>, %arg3: memref<8x64xf32, #tpu.memory_space<vmem>>, %arg4: memref<1x6x8x128xf32, #tpu.memory_space<vmem>>) attributes {dimension_semantics = [#tpu.dimension_semantics<parallel>, #tpu.dimension_semantics<arbitrary>], iteration_bounds = array<i64: 1, 1>, scalar_prefetch = 0 : i64, scratch_operands = 0 : i64, tpu.core_type = #tpu.core_type<tc>, window_params = [{transform_indices = @transform_0, window_bounds = array<i64: 8, 64>}, {transform_indices = @transform_1, window_bounds = array<i64: 8, 64>}, {transform_indices = @transform_2, window_bounds = array<i64: 1, 6, 8, 128>}]} {
    %c0_i32 = arith.constant 0 : i32
    %0 = arith.cmpi eq, %arg1, %c0_i32 : i32
    %1 = arith.extui %0 : i1 to i32
    %c0_i32_0 = arith.constant 0 : i32
    %2 = arith.cmpi ne, %1, %c0_i32_0 : i32
    scf.if %2 {
      %cst_59 = arith.constant 0.000000e+00 : f32
      %81 = vector.broadcast %cst_59 : f32 to vector<1x6x8x128xf32>
      %c0_60 = arith.constant 0 : index
      %c0_61 = arith.constant 0 : index
      %c0_62 = arith.constant 0 : index
      %c0_63 = arith.constant 0 : index
      %82 = vector.load %arg4[%c0_60, %c0_61, %c0_62, %c0_63] : memref<1x6x8x128xf32, #tpu.memory_space<vmem>>, vector<1x6x8x128xf32>
      tpu.vector_store %arg4[%c0_60, %c0_61, %c0_62, %c0_63], %81 {strides = array<i32>} : memref<1x6x8x128xf32, #tpu.memory_space<vmem>>, vector<1x6x8x128xf32>,
    } else {
    }
    %c0 = arith.constant 0 : index
    %c0_1 = arith.constant 0 : index
    %3 = vector.load %arg2[%c0, %c0_1] : memref<8x64xf32, #tpu.memory_space<vmem>>, vector<8x64xf32>
    %c0_2 = arith.constant 0 : index
    %c0_3 = arith.constant 0 : index
    %4 = vector.load %arg3[%c0_2, %c0_3] : memref<8x64xf32, #tpu.memory_space<vmem>>, vector<8x64xf32>
    %5 = arith.mulf %3, %4 : vector<8x64xf32>
    %cst = arith.constant 0.000000e+00 : f32
    %6 = vector.broadcast %cst : f32 to vector<8x64xf32>
    %7 = arith.maximumf %3, %6 : vector<8x64xf32>
    %8 = arith.subf %7, %5 : vector<8x64xf32>
    %9 = math.absf %3 : vector<8x64xf32>
    %cst_4 = arith.constant 0.000000e+00 : f32
    %10 = vector.broadcast %cst_4 : f32 to vector<8x64xf32>
    %11 = arith.subf %10, %9 : vector<8x64xf32>
    %12 = math.exp %11 : vector<8x64xf32>
    %cst_5 = arith.constant 1.000000e+00 : f32
    %13 = vector.broadcast %cst_5 : f32 to vector<8x64xf32>
    %14 = arith.addf %13, %12 : vector<8x64xf32>
    %15 = math.log %14 : vector<8x64xf32>
    %16 = arith.addf %8, %15 : vector<8x64xf32>
    %17 = arith.addf %3, %4 : vector<8x64xf32>
    %cst_6 = arith.constant 2.000000e+00 : f32
    %18 = vector.broadcast %cst_6 : f32 to vector<8x64xf32>
    %19 = arith.mulf %18, %5 : vector<8x64xf32>
    %20 = arith.subf %17, %19 : vector<8x64xf32>
    %cst_7 = arith.constant -8.000000e-01 : f32
    %21 = vector.broadcast %cst_7 : f32 to vector<8x64xf32>
    %22 = arith.mulf %21, %4 : vector<8x64xf32>
    %cst_8 = arith.constant 0.899999976 : f32
    %23 = vector.broadcast %cst_8 : f32 to vector<8x64xf32>
    %24 = arith.addf %23, %22 : vector<8x64xf32>
    %25 = arith.mulf %24, %16 : vector<8x64xf32>
    %26 = arith.mulf %20, %20 : vector<8x64xf32>
    %27 = arith.mulf %25, %26 : vector<8x64xf32>
    %cst_9 = arith.constant 5.000000e-01 : f32
    %28 = vector.broadcast %cst_9 : f32 to vector<8x64xf32>
    %29 = arith.cmpf ogt, %3, %28 : vector<8x64xf32>
    %30 = arith.extui %29 : vector<8x64xi1> to vector<8x64xi32>
    %31 = arith.sitofp %30 : vector<8x64xi32> to vector<8x64xf32>
    %32 = arith.mulf %4, %31 : vector<8x64xf32>
    %cst_10 = arith.constant dense<0.000000e+00> : vector<8xf32>
    %33 = vector.multi_reduction <add>, %27, %cst_10 [1] : vector<8x64xf32> to vector<8xf32>
    %34 = vector.shape_cast %33 : vector<8xf32> to vector<8x1xf32>
    %c0_11 = arith.constant 0 : index
    %c0_12 = arith.constant 0 : index
    %c0_13 = arith.constant 0 : index
    %c0_14 = arith.constant 0 : index
    %35 = vector.load %arg4[%c0_11, %c0_12, %c0_13, %c0_14] : memref<1x6x8x128xf32, #tpu.memory_space<vmem>>, vector<1x1x8x1xf32>
    %36 = vector.shape_cast %35 : vector<1x1x8x1xf32> to vector<8x1xf32>
    %37 = arith.addf %36, %34 : vector<8x1xf32>
    %c0_15 = arith.constant 0 : index
    %c0_16 = arith.constant 0 : index
    %c0_17 = arith.constant 0 : index
    %c0_18 = arith.constant 0 : index
    %38 = vector.load %arg4[%c0_15, %c0_16, %c0_17, %c0_18] : memref<1x6x8x128xf32, #tpu.memory_space<vmem>>, vector<1x1x8x1xf32>
    %39 = vector.shape_cast %38 : vector<1x1x8x1xf32> to vector<8x1xf32>
    %40 = vector.shape_cast %37 : vector<8x1xf32> to vector<1x1x8x1xf32>
    tpu.vector_store %arg4[%c0_15, %c0_16, %c0_17, %c0_18], %40 {strides = array<i32>} : memref<1x6x8x128xf32, #tpu.memory_space<vmem>>, vector<1x1x8x1xf32>,
    %cst_19 = arith.constant dense<0.000000e+00> : vector<8xf32>
    %41 = vector.multi_reduction <add>, %4, %cst_19 [1] : vector<8x64xf32> to vector<8xf32>
    %42 = vector.shape_cast %41 : vector<8xf32> to vector<8x1xf32>
    %c0_20 = arith.constant 0 : index
    %c1 = arith.constant 1 : index
    %c0_21 = arith.constant 0 : index
    %c0_22 = arith.constant 0 : index
    %43 = vector.load %arg4[%c0_20, %c1, %c0_21, %c0_22] : memref<1x6x8x128xf32, #tpu.memory_space<vmem>>, vector<1x1x8x1xf32>
    %44 = vector.shape_cast %43 : vector<1x1x8x1xf32> to vector<8x1xf32>
    %45 = arith.addf %44, %42 : vector<8x1xf32>
    %c0_23 = arith.constant 0 : index
    %c1_24 = arith.constant 1 : index
    %c0_25 = arith.constant 0 : index
    %c0_26 = arith.constant 0 : index
    %46 = vector.load %arg4[%c0_23, %c1_24, %c0_25, %c0_26] : memref<1x6x8x128xf32, #tpu.memory_space<vmem>>, vector<1x1x8x1xf32>
    %47 = vector.shape_cast %46 : vector<1x1x8x1xf32> to vector<8x1xf32>
    %48 = vector.shape_cast %45 : vector<8x1xf32> to vector<1x1x8x1xf32>
    tpu.vector_store %arg4[%c0_23, %c1_24, %c0_25, %c0_26], %48 {strides = array<i32>} : memref<1x6x8x128xf32, #tpu.memory_space<vmem>>, vector<1x1x8x1xf32>,
    %cst_27 = arith.constant dense<0.000000e+00> : vector<8xf32>
    %49 = vector.multi_reduction <add>, %3, %cst_27 [1] : vector<8x64xf32> to vector<8xf32>
    %50 = vector.shape_cast %49 : vector<8xf32> to vector<8x1xf32>
    %c0_28 = arith.constant 0 : index
    %c2 = arith.constant 2 : index
    %c0_29 = arith.constant 0 : index
    %c0_30 = arith.constant 0 : index
    %51 = vector.load %arg4[%c0_28, %c2, %c0_29, %c0_30] : memref<1x6x8x128xf32, #tpu.memory_space<vmem>>, vector<1x1x8x1xf32>
    %52 = vector.shape_cast %51 : vector<1x1x8x1xf32> to vector<8x1xf32>
    %53 = arith.addf %52, %50 : vector<8x1xf32>
    %c0_31 = arith.constant 0 : index
    %c2_32 = arith.constant 2 : index
    %c0_33 = arith.constant 0 : index
    %c0_34 = arith.constant 0 : index
    %54 = vector.load %arg4[%c0_31, %c2_32, %c0_33, %c0_34] : memref<1x6x8x128xf32, #tpu.memory_space<vmem>>, vector<1x1x8x1xf32>
    %55 = vector.shape_cast %54 : vector<1x1x8x1xf32> to vector<8x1xf32>
    %56 = vector.shape_cast %53 : vector<8x1xf32> to vector<1x1x8x1xf32>
    tpu.vector_store %arg4[%c0_31, %c2_32, %c0_33, %c0_34], %56 {strides = array<i32>} : memref<1x6x8x128xf32, #tpu.memory_space<vmem>>, vector<1x1x8x1xf32>,
    %cst_35 = arith.constant dense<0.000000e+00> : vector<8xf32>
    %57 = vector.multi_reduction <add>, %5, %cst_35 [1] : vector<8x64xf32> to vector<8xf32>
    %58 = vector.shape_cast %57 : vector<8xf32> to vector<8x1xf32>
    %c0_36 = arith.constant 0 : index
    %c3 = arith.constant 3 : index
    %c0_37 = arith.constant 0 : index
    %c0_38 = arith.constant 0 : index
    %59 = vector.load %arg4[%c0_36, %c3, %c0_37, %c0_38] : memref<1x6x8x128xf32, #tpu.memory_space<vmem>>, vector<1x1x8x1xf32>
    %60 = vector.shape_cast %59 : vector<1x1x8x1xf32> to vector<8x1xf32>
    %61 = arith.addf %60, %58 : vector<8x1xf32>
    %c0_39 = arith.constant 0 : index
    %c3_40 = arith.constant 3 : index
    %c0_41 = arith.constant 0 : index
    %c0_42 = arith.constant 0 : index
    %62 = vector.load %arg4[%c0_39, %c3_40, %c0_41, %c0_42] : memref<1x6x8x128xf32, #tpu.memory_space<vmem>>, vector<1x1x8x1xf32>
    %63 = vector.shape_cast %62 : vector<1x1x8x1xf32> to vector<8x1xf32>
    %64 = vector.shape_cast %61 : vector<8x1xf32> to vector<1x1x8x1xf32>
    tpu.vector_store %arg4[%c0_39, %c3_40, %c0_41, %c0_42], %64 {strides = array<i32>} : memref<1x6x8x128xf32, #tpu.memory_space<vmem>>, vector<1x1x8x1xf32>,
    %cst_43 = arith.constant dense<0.000000e+00> : vector<8xf32>
    %65 = vector.multi_reduction <add>, %31, %cst_43 [1] : vector<8x64xf32> to vector<8xf32>
    %66 = vector.shape_cast %65 : vector<8xf32> to vector<8x1xf32>
    %c0_44 = arith.constant 0 : index
    %c4 = arith.constant 4 : index
    %c0_45 = arith.constant 0 : index
    %c0_46 = arith.constant 0 : index
    %67 = vector.load %arg4[%c0_44, %c4, %c0_45, %c0_46] : memref<1x6x8x128xf32, #tpu.memory_space<vmem>>, vector<1x1x8x1xf32>
    %68 = vector.shape_cast %67 : vector<1x1x8x1xf32> to vector<8x1xf32>
    %69 = arith.addf %68, %66 : vector<8x1xf32>
    %c0_47 = arith.constant 0 : index
    %c4_48 = arith.constant 4 : index
    %c0_49 = arith.constant 0 : index
    %c0_50 = arith.constant 0 : index
    %70 = vector.load %arg4[%c0_47, %c4_48, %c0_49, %c0_50] : memref<1x6x8x128xf32, #tpu.memory_space<vmem>>, vector<1x1x8x1xf32>
    %71 = vector.shape_cast %70 : vector<1x1x8x1xf32> to vector<8x1xf32>
    %72 = vector.shape_cast %69 : vector<8x1xf32> to vector<1x1x8x1xf32>
    tpu.vector_store %arg4[%c0_47, %c4_48, %c0_49, %c0_50], %72 {strides = array<i32>} : memref<1x6x8x128xf32, #tpu.memory_space<vmem>>, vector<1x1x8x1xf32>,
    %cst_51 = arith.constant dense<0.000000e+00> : vector<8xf32>
    %73 = vector.multi_reduction <add>, %32, %cst_51 [1] : vector<8x64xf32> to vector<8xf32>
    %74 = vector.shape_cast %73 : vector<8xf32> to vector<8x1xf32>
    %c0_52 = arith.constant 0 : index
    %c5 = arith.constant 5 : index
    %c0_53 = arith.constant 0 : index
    %c0_54 = arith.constant 0 : index
    %75 = vector.load %arg4[%c0_52, %c5, %c0_53, %c0_54] : memref<1x6x8x128xf32, #tpu.memory_space<vmem>>, vector<1x1x8x1xf32>
    %76 = vector.shape_cast %75 : vector<1x1x8x1xf32> to vector<8x1xf32>
    %77 = arith.addf %76, %74 : vector<8x1xf32>
    %c0_55 = arith.constant 0 : index
    %c5_56 = arith.constant 5 : index
    %c0_57 = arith.constant 0 : index
    %c0_58 = arith.constant 0 : index
    %78 = vector.load %arg4[%c0_55, %c5_56, %c0_57, %c0_58] : memref<1x6x8x128xf32, #tpu.memory_space<vmem>>, vector<1x1x8x1xf32>
    %79 = vector.shape_cast %78 : vector<1x1x8x1xf32> to vector<8x1xf32>
    %80 = vector.shape_cast %77 : vector<8x1xf32> to vector<1x1x8x1xf32>
    tpu.vector_store %arg4[%c0_55, %c5_56, %c0_57, %c0_58], %80 {strides = array<i32>} : memref<1x6x8x128xf32, #tpu.memory_space<vmem>>, vector<1x1x8x1xf32>,
    return
  }
  func.func @transform_0(%arg0: i32, %arg1: i32) -> (i32, i32) {
    %c1_i32 = arith.constant 1 : i32
    %0 = arith.muli %arg0, %c1_i32 : i32
    %1 = arith.addi %0, %arg1 : i32
    %c0_i32 = arith.constant 0 : i32
    %c0_i32_0 = arith.constant 0 : i32
    return %c0_i32, %1 : i32, i32
  }
  func.func @transform_1(%arg0: i32, %arg1: i32) -> (i32, i32) {
    %c1_i32 = arith.constant 1 : i32
    %0 = arith.muli %arg0, %c1_i32 : i32
    %1 = arith.addi %0, %arg1 : i32
    %c0_i32 = arith.constant 0 : i32
    %c0_i32_0 = arith.constant 0 : i32
    return %c0_i32, %1 : i32, i32
  }
  func.func @transform_2(%arg0: i32, %arg1: i32) -> (i32, i32, i32, i32) {
    %c0_i32 = arith.constant 0 : i32
    %c0_i32_0 = arith.constant 0 : i32
    %c0_i32_1 = arith.constant 0 : i32
    %c0_i32_2 = arith.constant 0 : i32
    return %arg0, %c0_i32, %c0_i32_0, %c0_i32_1 : i32, i32, i32, i32
  }
}

</mosaic_0001>

<llo_original>
// kernel: segmentation_loss.1
$region0: #{segmentation_loss.1}
  #allocation0 [shape = 'u32[]', space=smem, size = 0x4, offset = 0x4, fixed_abs, tag = 'smem constant byte address 0x4 - core index']
  #allocation1 [shape = 'u32[144,128]{1,0:T(1,128)}', space=vmem, size = 0x12000, scoped, tag = 'internal scratch']
  %s0 = inlined_call_operand.vmem [shape: f32[8,64], index: 0, kind: input, shape index: {}]
  %s1 = inlined_call_operand.vmem [shape: f32[8,64], index: 1, kind: input, shape index: {}]
  %s2 = inlined_call_operand.vmem [shape: f32[1,6,8,128], index: 2, kind: output, shape index: {}]
  %s3 = sld [smem:[#allocation0]]
  $region22: #{segmentation_loss.1} parent=0
    _
  %s5 = ssub.s32 1, %s3
  %s6 = scalar_select 0, %s5, %s3
  // Predicated region
  $region2: #{segmentation_loss.1} parent=0 // pred_check
    _
  $region3: #{segmentation_loss.1} parent=0 // pred_check_branch
    %8 = sbr.rel (0) target = $region5
  $region4: #{segmentation_loss.1} parent=0 // pred_region
    %s9 = sadd.s32 0, 0
    %p10 = scmp.lt.s32.totalorder %s9, 0
    %s11 = scalar_select %p10, %s9, 0
    %s12 = smul.addr %s11, 8
    %s13 = scalar_lea.vmem %s0, %s12
    %s14 = sadd.s32 0, 0
  $region5: #{segmentation_loss.1} parent=0 // pred_fallthru
    _
  // Predicated region
  $region6: #{segmentation_loss.1} parent=0 // pred_check
    _
  $region7: #{segmentation_loss.1} parent=0 // pred_check_branch
    %16 = sbr.rel (0) target = $region9
  $region8: #{segmentation_loss.1} parent=0 // pred_region
    %s17 = sadd.s32 0, 0
    %p18 = scmp.lt.s32.totalorder %s17, 0
    %s19 = scalar_select %p18, %s17, 0
    %s20 = smul.addr %s19, 8
    %s21 = scalar_lea.vmem %s1, %s20
    %s22 = sadd.s32 0, 0
  $region9: #{segmentation_loss.1} parent=0 // pred_fallthru
    _
  %s23 = sadd.s32 0, 0
  %p24 = scmp.lt.s32.totalorder %s23, 0
  %s25 = scalar_select %p24, %s23, 0
  %s26 = smul.addr %s25, 8
  %s27 = scalar_lea.vmem %s0, %s26
  %s28 = sadd.s32 0, 0
  %p29 = scmp.lt.s32.totalorder %s28, 0
  %s30 = scalar_select %p29, %s28, 0
  %s31 = smul.addr %s30, 8
  %s32 = scalar_lea.vmem %s1, %s31
  %s33 = sadd.s32 0, 0
  %p34 = scmp.lt.s32.totalorder %s33, 0
  %s35 = scalar_select %p34, %s33, 0
  %s36 = smul.addr %s35, 8
  %s37 = scalar_lea.vmem %s0, %s36
  %s38 = sadd.s32 0, 0
  %s39 = sadd.s32 0, 0
  %p40 = scmp.lt.s32.totalorder %s39, 0
  %s41 = scalar_select %p40, %s39, 0
  %s42 = smul.addr %s41, 8
  %s43 = scalar_lea.vmem %s1, %s42
  %s44 = sadd.s32 0, 0
  %p45 = scmp.eq.s32.totalorder 0, 0
  // Predicated region
  $region10: #{segmentation_loss.1} parent=0 // pred_check
    %p46 = pneg %p45
  $region11: #{segmentation_loss.1} parent=0 // pred_check_branch
    %48 = sbr.rel (%p46) target = $region13
  $region12: #{segmentation_loss.1} parent=0 // pred_region
    %49 = vst [vmem:[%s2] sm:$0xff] 0.0
    %50 = vst [vmem:[%s2 + $0x8] sm:$0xff] 0.0
    %51 = vst [vmem:[%s2 + $0x10] sm:$0xff] 0.0
    %52 = vst [vmem:[%s2 + $0x18] sm:$0xff] 0.0
    %53 = vst [vmem:[%s2 + $0x20] sm:$0xff] 0.0
    %54 = vst [vmem:[%s2 + $0x28] sm:$0xff] 0.0
  $region13: #{segmentation_loss.1} parent=0 // pred_fallthru
    _
  %v55 = vld [vmem:[%s37] sm:$0xff]
  %v56 = vld [vmem:[%s43] sm:$0xff]
  %v57 = vmul.f32 %v55, %v56
  %v58 = vmax.f32 %v55, 0.0
  %v59 = vsub.f32 %v58, %v57
  %v60 = vand.u32 2147483647, %v55
  %v61 = vsub.f32 0.0, %v60
  %v62 = vmul.f32 %v61, 1.442695
  %v63 = vpow.pop %v62
  %v64 = vadd.f32 %v63, 1.0
  %v65 = vlog2.pop %v64
  %v66 = vmul.f32 %v65, 0.6931472
  %v67 = vadd.f32 %v59, %v66
  %v68 = vadd.f32 %v55, %v56
  %v69 = vmul.f32 %v57, 2.0
  %v70 = vsub.f32 %v68, %v69
  %v71 = vmul.f32 %v56, -0.8
  %v72 = vadd.f32 %v71, 0.9
  %v73 = vmul.f32 %v72, %v67
  %v74 = vmul.f32 %v70, %v70
  %v75 = vmul.f32 %v73, %v74
  %vm76 = vcmp.gt.f32.partialorder %v55, 0.5
  %v77 = vsel %vm76, 1, 0
  %v78 = vcvt.s32.f32 %v77
  %v79 = vmul.f32 %v56, %v78
  %vm80 = vcmask 523264
  %v81 = vsel %vm80, %v75, 0.0
  %82 = vadd.xlane.f32.xlu0 %v81
  %v83 = vpop.xlane.xlu0 %82
  %v84 = vld [vmem:[%s2] sm:$0xff]
  %v85 = vadd.f32 %v84, %v83
  %vm86 = vcmask 7168
  %87 = vst.msk [vmem:[%s2] sm:$0xff] %vm86, %v85
  %v88 = vsel %vm80, %v56, 0.0
  %89 = vadd.xlane.f32.xlu0 %v88
  %v90 = vpop.xlane.xlu0 %89
  %s91 = scalar_lea.vmem %s2, 8
  %v92 = vld [vmem:[%s91] sm:$0xff]
  %v93 = vadd.f32 %v92, %v90
  %94 = vst.msk [vmem:[%s91] sm:$0xff] %vm86, %v93
  %v95 = vsel %vm80, %v55, 0.0
  %96 = vadd.xlane.f32.xlu0 %v95
  %v97 = vpop.xlane.xlu0 %96
  %s98 = scalar_lea.vmem %s2, 16
  %v99 = vld [vmem:[%s98] sm:$0xff]
  %v100 = vadd.f32 %v99, %v97
  %101 = vst.msk [vmem:[%s98] sm:$0xff] %vm86, %v100
  %v102 = vsel %vm80, %v57, 0.0
  %103 = vadd.xlane.f32.xlu0 %v102
  %v104 = vpop.xlane.xlu0 %103
  %s105 = scalar_lea.vmem %s2, 24
  %v106 = vld [vmem:[%s105] sm:$0xff]
  %v107 = vadd.f32 %v106, %v104
  %108 = vst.msk [vmem:[%s105] sm:$0xff] %vm86, %v107
  %v109 = vsel %vm80, %v78, 0.0
  %110 = vadd.xlane.f32.xlu0 %v109
  %v111 = vpop.xlane.xlu0 %110
  %s112 = scalar_lea.vmem %s2, 32
  %v113 = vld [vmem:[%s112] sm:$0xff]
  %v114 = vadd.f32 %v113, %v111
  %115 = vst.msk [vmem:[%s112] sm:$0xff] %vm86, %v114
  %v116 = vsel %vm80, %v79, 0.0
  %117 = vadd.xlane.f32.xlu0 %v116
  %v118 = vpop.xlane.xlu0 %117
  %s119 = scalar_lea.vmem %s2, 40
  %v120 = vld [vmem:[%s119] sm:$0xff]
  %v121 = vadd.f32 %v120, %v118
  %122 = vst.msk [vmem:[%s119] sm:$0xff] %vm86, %v121
  // Predicated region
  $region14: #{segmentation_loss.1} parent=0 // pred_check
    _
  $region15: #{segmentation_loss.1} parent=0 // pred_check_branch
    %124 = sbr.rel (0) target = $region17
  $region16: #{segmentation_loss.1} parent=0 // pred_region
    _
  $region17: #{segmentation_loss.1} parent=0 // pred_fallthru
    _
  // Predicated region
  $region18: #{segmentation_loss.1} parent=0 // pred_check
    _
  $region19: #{segmentation_loss.1} parent=0 // pred_check_branch
    %126 = sbr.rel (0) target = $region21
  $region20: #{segmentation_loss.1} parent=0 // pred_region
    _
  $region21: #{segmentation_loss.1} parent=0 // pred_fallthru
    _

</llo_original>
